<compile_context>
chip_gen: v6e
topology: v6e:2x2x1
jax: 0.10.0
libtpu: 0.0.40
codegen_flags: <defaults>
</compile_context>

<pallas_src>
import numpy as np
import jax
import jax.numpy as jnp
from jax.experimental import pallas as pl
from jax.experimental.pallas import tpu as pltpu


# -----------------------------------------------------------------------------
# GELU (tanh approximation, GPT-2 style) - used in kernel and reference.
# -----------------------------------------------------------------------------
def gelu_tanh(x):
    c = 0.7978845608028654  # sqrt(2/pi)
    return 0.5 * x * (1.0 + jnp.tanh(c * (x + 0.044715 * x * x * x)))


# -----------------------------------------------------------------------------
# Kernel
# -----------------------------------------------------------------------------
def _mlp_kernel(x_ref, fcw_ref, fcb_ref, pjw_ref, pjb_ref,
                vhf_ref, suf_ref, vhp_ref, sup_ref, out_ref):
    f32 = jnp.float32
    bf16 = jnp.bfloat16

    xb = x_ref[...]                                   # (TM, H) bf16 (pre-cast)
    pjb = pjb_ref[...]                                # (1, H)  f32
    # fc bias feeds both paths: broadcast once and reuse.
    fcb_b = jnp.broadcast_to(fcb_ref[...], (xb.shape[0], fcb_ref.shape[1]))

    # ----- original MLP path (c_proj weight pre-scaled by (1 - alpha)) -------
    h = jnp.dot(xb, fcw_ref[...], preferred_element_type=f32) + fcb_b
    a = gelu_tanh(h.astype(bf16))                     # bf16 GELU (VPU/EUP bf16)
    orig = jnp.dot(a, pjw_ref[...], preferred_element_type=f32)

    # ----- SVD-routed path (S folded into U.T, alpha folded into su_proj) ----
    code = jnp.dot(xb, vhf_ref[...], preferred_element_type=f32)            # (TM, r)
    h2 = jnp.dot(code.astype(bf16), suf_ref[...],
                 preferred_element_type=f32) + fcb_b                        # (TM, I)
    a2 = gelu_tanh(h2.astype(bf16))
    code2 = jnp.dot(a2, vhp_ref[...], preferred_element_type=f32)           # (TM, r)
    svd = jnp.dot(code2.astype(bf16), sup_ref[...],
                  preferred_element_type=f32)                               # (TM, H)

    # Blend already folded into the weights; c_proj bias added exactly once.
    out_ref[...] = orig + svd + pjb


# -----------------------------------------------------------------------------
# Wrapper
# -----------------------------------------------------------------------------
def mlp_svd_routed(x, params):
    """params = (c_fc_w, c_fc_b, c_proj_w_scaled, c_proj_b,
                 vh_fc_t, su_fc_t, vh_proj_t, su_proj_scaled)
       Weights pre-cast to bf16, biases f32.  S folded into the su_* factors,
       alpha folded into (c_proj_w_scaled, su_proj_scaled) at setup time."""
    B, S, H = x.shape
    M = B * S
    x2 = x.reshape(M, H).astype(jnp.bfloat16)   # pre-cast once: halves x DMA

    # Per-generation VMEM budget (leave ~12.5% headroom under physical VMEM):
    # v7x: 64 MiB -> ~56 MB limit, TM<=256.  v5e/v6e: 128 MiB -> ~112 MB, TM<=512.
    try:
        vmem_cap = pltpu.get_tpu_info().vmem_capacity_bytes
    except Exception:
        vmem_cap = 64 * 1024 * 1024
    vmem_limit = int(vmem_cap * 7 // 8)

    max_tm = 512 if vmem_cap >= 96 * 1024 * 1024 else 256
    TM = M
    for tm in (512, 256, 128):
        if tm <= max_tm and M >= tm and M % tm == 0:
            TM = tm
            break

    weights = list(params)

    def build(buffered_weights):
        x_spec = pl.BlockSpec((TM, H), lambda m: (m, 0))
        if buffered_weights:
            # Grid-invariant weights (constant index map, never re-fetched):
            # single-buffer them so the default 2-deep pipeline doesn't double
            # their VMEM footprint.
            w_specs = [pl.BlockSpec(w.shape, lambda m: (0, 0),
                                    pipeline_mode=pl.Buffered(1))
                       for w in weights]
        else:
            w_specs = [pl.BlockSpec(w.shape, lambda m: (0, 0)) for w in weights]
        return pl.pallas_call(
            _mlp_kernel,
            out_shape=jax.ShapeDtypeStruct((M, H), jnp.float32),
            grid=(M // TM,),
            in_specs=[x_spec] + w_specs,
            out_specs=pl.BlockSpec((TM, H), lambda m: (m, 0)),
            compiler_params=pltpu.CompilerParams(
                dimension_semantics=("parallel",),
                vmem_limit_bytes=vmem_limit,
            ),
        )

    try:
        out2 = build(True)(x2, *weights)
    except Exception:
        # Fallback for jax versions without pipeline_mode=pl.Buffered on BlockSpec.
        out2 = build(False)(x2, *weights)

    return out2.reshape(B, S, H)


# -----------------------------------------------------------------------------
# Pure-JAX f32 reference (same math, un-folded SVD factors, explicit blend)
# -----------------------------------------------------------------------------
def reference(x, c_fc_w, c_fc_b, c_proj_w, c_proj_b,
              U_fc, S_fc, Vh_fc, U_proj, S_proj, Vh_proj, *, alpha):
    h = x @ c_fc_w + c_fc_b[0]
    orig = gelu_tanh(h) @ c_proj_w + c_proj_b[0]

    code = (x @ Vh_fc.T) * S_fc
    hid = code @ U_fc.T + c_fc_b[0]
    act = gelu_tanh(hid)
    code2 = (act @ Vh_proj.T) * S_proj
    svd_out = code2 @ U_proj.T + c_proj_b[0]

    return alpha * svd_out + (1.0 - alpha) * orig


# -----------------------------------------------------------------------------
# Main
# -----------------------------------------------------------------------------
if __name__ == "__main__":
    B, S, H = 2, 8, 32
    I = 4 * H
    ALPHA = 0.5

    key = jax.random.PRNGKey(0)
    kx, kw1, kb1, kw2, kb2 = jax.random.split(key, 5)

    x = jax.random.normal(kx, (B, S, H), dtype=jnp.float32)
    # GPT-2 Conv1D convention: y = x @ W + b
    c_fc_w = 0.02 * jax.random.normal(kw1, (H, I), dtype=jnp.float32)
    c_fc_b = 0.02 * jax.random.normal(kb1, (1, I), dtype=jnp.float32)
    c_proj_w = 0.02 * jax.random.normal(kw2, (I, H), dtype=jnp.float32)
    c_proj_b = 0.02 * jax.random.normal(kb2, (1, H), dtype=jnp.float32)

    # --- SVD parameter setup (glue, done once outside the kernel) -------------
    # Module: fc_weight = c_fc.weight.T -> (I, H); proj_weight = c_proj.weight.T -> (H, I)
    fc_weight = np.asarray(c_fc_w).T          # (I, H)
    proj_weight = np.asarray(c_proj_w).T      # (H, I)

    U_fc, S_fc, Vh_fc = np.linalg.svd(fc_weight, full_matrices=False)          # (I,r),(r,),(r,H)
    U_proj, S_proj, Vh_proj = np.linalg.svd(proj_weight, full_matrices=False)  # (H,r),(r,),(r,I)

    # Kernel-side factors: fold singular values into the U side, fold alpha into
    # the output-side weights, pre-cast to bf16 (all in f32, once, at setup).
    vh_fc_t = jnp.asarray(Vh_fc.T, jnp.bfloat16)                                # (H, r)
    su_fc_t = jnp.asarray(S_fc[:, None] * U_fc.T, jnp.bfloat16)                 # (r, I)
    vh_proj_t = jnp.asarray(Vh_proj.T, jnp.bfloat16)                            # (I, r)
    su_proj_scaled = jnp.asarray(ALPHA * (S_proj[:, None] * U_proj.T),
                                 jnp.bfloat16)                                  # (r, H)
    c_proj_w_scaled = jnp.asarray((1.0 - ALPHA) * np.asarray(c_proj_w),
                                  jnp.bfloat16)                                 # (I, H)

    params = (c_fc_w.astype(jnp.bfloat16), c_fc_b,
              c_proj_w_scaled, c_proj_b,
              vh_fc_t, su_fc_t, vh_proj_t, su_proj_scaled)

    out = mlp_svd_routed(x, params)
    out = jax.block_until_ready(out)

    ref = jax.block_until_ready(reference(
        x, c_fc_w, c_fc_b, c_proj_w, c_proj_b,
        jnp.asarray(U_fc), jnp.asarray(S_fc), jnp.asarray(Vh_fc),
        jnp.asarray(U_proj), jnp.asarray(S_proj), jnp.asarray(Vh_proj),
        alpha=ALPHA))

    assert out.shape == (B, S, H)
    err = float(jnp.max(jnp.abs(out - ref)))
    # bf16 matmul operands + bf16 GELU with f32 accumulation -> relaxed tolerance.
    assert jnp.allclose(out, ref, rtol=3e-2, atol=5e-3), f"max abs err {err}"

    print("KERNEL_OK")
</pallas_src>

<mosaic_0001>
module attributes {stable_mosaic.version = 11 : i64} {
  func.func @_mlp_kernel(%arg0: i32, %arg1: memref<16x32xbf16, #tpu.memory_space<vmem>>, %arg2: memref<32x128xbf16, #tpu.memory_space<vmem>>, %arg3: memref<1x128xf32, #tpu.memory_space<vmem>>, %arg4: memref<128x32xbf16, #tpu.memory_space<vmem>>, %arg5: memref<1x32xf32, #tpu.memory_space<vmem>>, %arg6: memref<32x32xbf16, #tpu.memory_space<vmem>>, %arg7: memref<32x128xbf16, #tpu.memory_space<vmem>>, %arg8: memref<128x32xbf16, #tpu.memory_space<vmem>>, %arg9: memref<32x32xbf16, #tpu.memory_space<vmem>>, %arg10: memref<16x32xf32, #tpu.memory_space<vmem>>) attributes {dimension_semantics = [#tpu.dimension_semantics<parallel>], iteration_bounds = array<i64: 1>, scalar_prefetch = 0 : i64, scratch_operands = 0 : i64, tpu.core_type = #tpu.core_type<tc>, window_params = [{transform_indices = @transform_0, window_bounds = array<i64: 16, 32>}, {pipeline_mode = #tpu.pipeline_mode<synchronous>, transform_indices = @transform_1, window_bounds = array<i64: 32, 128>}, {pipeline_mode = #tpu.pipeline_mode<synchronous>, transform_indices = @transform_2, window_bounds = array<i64: 1, 128>}, {pipeline_mode = #tpu.pipeline_mode<synchronous>, transform_indices = @transform_3, window_bounds = array<i64: 128, 32>}, {pipeline_mode = #tpu.pipeline_mode<synchronous>, transform_indices = @transform_4, window_bounds = array<i64: 1, 32>}, {pipeline_mode = #tpu.pipeline_mode<synchronous>, transform_indices = @transform_5, window_bounds = array<i64: 32, 32>}, {pipeline_mode = #tpu.pipeline_mode<synchronous>, transform_indices = @transform_6, window_bounds = array<i64: 32, 128>}, {pipeline_mode = #tpu.pipeline_mode<synchronous>, transform_indices = @transform_7, window_bounds = array<i64: 128, 32>}, {pipeline_mode = #tpu.pipeline_mode<synchronous>, transform_indices = @transform_8, window_bounds = array<i64: 32, 32>}, {transform_indices = @transform_9, window_bounds = array<i64: 16, 32>}]} {
    %c0 = arith.constant 0 : index
    %c0_0 = arith.constant 0 : index
    %0 = vector.load %arg1[%c0, %c0_0] : memref<16x32xbf16, #tpu.memory_space<vmem>>, vector<16x32xbf16>
    %c0_1 = arith.constant 0 : index
    %c0_2 = arith.constant 0 : index
    %1 = vector.load %arg5[%c0_1, %c0_2] : memref<1x32xf32, #tpu.memory_space<vmem>>, vector<1x32xf32>
    %c0_3 = arith.constant 0 : index
    %c0_4 = arith.constant 0 : index
    %2 = vector.load %arg3[%c0_3, %c0_4] : memref<1x128xf32, #tpu.memory_space<vmem>>, vector<1x128xf32>
    %3 = vector.shape_cast %2 : vector<1x128xf32> to vector<1x128xf32>
    %4 = vector.broadcast %3 : vector<1x128xf32> to vector<16x128xf32>
    %c0_5 = arith.constant 0 : index
    %c0_6 = arith.constant 0 : index
    %5 = vector.load %arg2[%c0_5, %c0_6] : memref<32x128xbf16, #tpu.memory_space<vmem>>, vector<32x128xbf16>
    %cst = arith.constant dense<0.000000e+00> : vector<16x128xf32>
    %6 = tpu.matmul %0, %5, %cst {dimension_numbers = #tpu.dot_dimension_numbers<[1], [0], [0], [1], [0, 0, 1, 1], [], []>} : vector<16x32xbf16>, vector<32x128xbf16>, vector<16x128xf32> -> vector<16x128xf32>
    %7 = arith.addf %6, %4 : vector<16x128xf32>
    %8 = arith.truncf %7 : vector<16x128xf32> to vector<16x128xbf16>
    %cst_7 = arith.constant 5.000000e-01 : bf16
    %9 = vector.broadcast %cst_7 : bf16 to vector<16x128xbf16>
    %10 = arith.mulf %9, %8 : vector<16x128xbf16>
    %cst_8 = arith.constant 4.467770e-02 : bf16
    %11 = vector.broadcast %cst_8 : bf16 to vector<16x128xbf16>
    %12 = arith.mulf %11, %8 : vector<16x128xbf16>
    %13 = arith.mulf %12, %8 : vector<16x128xbf16>
    %14 = arith.mulf %13, %8 : vector<16x128xbf16>
    %15 = arith.addf %8, %14 : vector<16x128xbf16>
    %cst_9 = arith.constant 7.968750e-01 : bf16
    %16 = vector.broadcast %cst_9 : bf16 to vector<16x128xbf16>
    %17 = arith.mulf %16, %15 : vector<16x128xbf16>
    %18 = math.tanh %17 : vector<16x128xbf16>
    %cst_10 = arith.constant 1.000000e+00 : bf16
    %19 = vector.broadcast %cst_10 : bf16 to vector<16x128xbf16>
    %20 = arith.addf %19, %18 : vector<16x128xbf16>
    %21 = arith.mulf %10, %20 : vector<16x128xbf16>
    %c0_11 = arith.constant 0 : index
    %c0_12 = arith.constant 0 : index
    %22 = vector.load %arg4[%c0_11, %c0_12] : memref<128x32xbf16, #tpu.memory_space<vmem>>, vector<128x32xbf16>
    %cst_13 = arith.constant dense<0.000000e+00> : vector<16x32xf32>
    %23 = tpu.matmul %21, %22, %cst_13 {dimension_numbers = #tpu.dot_dimension_numbers<[1], [0], [0], [1], [0, 0, 1, 1], [], []>} : vector<16x128xbf16>, vector<128x32xbf16>, vector<16x32xf32> -> vector<16x32xf32>
    %c0_14 = arith.constant 0 : index
    %c0_15 = arith.constant 0 : index
    %24 = vector.load %arg6[%c0_14, %c0_15] : memref<32x32xbf16, #tpu.memory_space<vmem>>, vector<32x32xbf16>
    %cst_16 = arith.constant dense<0.000000e+00> : vector<16x32xf32>
    %25 = tpu.matmul %0, %24, %cst_16 {dimension_numbers = #tpu.dot_dimension_numbers<[1], [0], [0], [1], [0, 0, 1, 1], [], []>} : vector<16x32xbf16>, vector<32x32xbf16>, vector<16x32xf32> -> vector<16x32xf32>
    %26 = arith.truncf %25 : vector<16x32xf32> to vector<16x32xbf16>
    %c0_17 = arith.constant 0 : index
    %c0_18 = arith.constant 0 : index
    %27 = vector.load %arg7[%c0_17, %c0_18] : memref<32x128xbf16, #tpu.memory_space<vmem>>, vector<32x128xbf16>
    %cst_19 = arith.constant dense<0.000000e+00> : vector<16x128xf32>
    %28 = tpu.matmul %26, %27, %cst_19 {dimension_numbers = #tpu.dot_dimension_numbers<[1], [0], [0], [1], [0, 0, 1, 1], [], []>} : vector<16x32xbf16>, vector<32x128xbf16>, vector<16x128xf32> -> vector<16x128xf32>
    %29 = arith.addf %28, %4 : vector<16x128xf32>
    %30 = arith.truncf %29 : vector<16x128xf32> to vector<16x128xbf16>
    %cst_20 = arith.constant 5.000000e-01 : bf16
    %31 = vector.broadcast %cst_20 : bf16 to vector<16x128xbf16>
    %32 = arith.mulf %31, %30 : vector<16x128xbf16>
    %cst_21 = arith.constant 4.467770e-02 : bf16
    %33 = vector.broadcast %cst_21 : bf16 to vector<16x128xbf16>
    %34 = arith.mulf %33, %30 : vector<16x128xbf16>
    %35 = arith.mulf %34, %30 : vector<16x128xbf16>
    %36 = arith.mulf %35, %30 : vector<16x128xbf16>
    %37 = arith.addf %30, %36 : vector<16x128xbf16>
    %cst_22 = arith.constant 7.968750e-01 : bf16
    %38 = vector.broadcast %cst_22 : bf16 to vector<16x128xbf16>
    %39 = arith.mulf %38, %37 : vector<16x128xbf16>
    %40 = math.tanh %39 : vector<16x128xbf16>
    %cst_23 = arith.constant 1.000000e+00 : bf16
    %41 = vector.broadcast %cst_23 : bf16 to vector<16x128xbf16>
    %42 = arith.addf %41, %40 : vector<16x128xbf16>
    %43 = arith.mulf %32, %42 : vector<16x128xbf16>
    %c0_24 = arith.constant 0 : index
    %c0_25 = arith.constant 0 : index
    %44 = vector.load %arg8[%c0_24, %c0_25] : memref<128x32xbf16, #tpu.memory_space<vmem>>, vector<128x32xbf16>
    %cst_26 = arith.constant dense<0.000000e+00> : vector<16x32xf32>
    %45 = tpu.matmul %43, %44, %cst_26 {dimension_numbers = #tpu.dot_dimension_numbers<[1], [0], [0], [1], [0, 0, 1, 1], [], []>} : vector<16x128xbf16>, vector<128x32xbf16>, vector<16x32xf32> -> vector<16x32xf32>
    %46 = arith.truncf %45 : vector<16x32xf32> to vector<16x32xbf16>
    %c0_27 = arith.constant 0 : index
    %c0_28 = arith.constant 0 : index
    %47 = vector.load %arg9[%c0_27, %c0_28] : memref<32x32xbf16, #tpu.memory_space<vmem>>, vector<32x32xbf16>
    %cst_29 = arith.constant dense<0.000000e+00> : vector<16x32xf32>
    %48 = tpu.matmul %46, %47, %cst_29 {dimension_numbers = #tpu.dot_dimension_numbers<[1], [0], [0], [1], [0, 0, 1, 1], [], []>} : vector<16x32xbf16>, vector<32x32xbf16>, vector<16x32xf32> -> vector<16x32xf32>
    %49 = arith.addf %23, %48 : vector<16x32xf32>
    %50 = vector.broadcast %1 : vector<1x32xf32> to vector<16x32xf32>
    %51 = arith.addf %49, %50 : vector<16x32xf32>
    %c0_30 = arith.constant 0 : index
    %c0_31 = arith.constant 0 : index
    %52 = vector.load %arg10[%c0_30, %c0_31] : memref<16x32xf32, #tpu.memory_space<vmem>>, vector<16x32xf32>
    tpu.vector_store %arg10[%c0_30, %c0_31], %51 {strides = array<i32>} : memref<16x32xf32, #tpu.memory_space<vmem>>, vector<16x32xf32>,
    return
  }
  func.func @transform_0(%arg0: i32) -> (i32, i32) {
    %c0_i32 = arith.constant 0 : i32
    %c0_i32_0 = arith.constant 0 : i32
    return %arg0, %c0_i32 : i32, i32
  }
  func.func @transform_1(%arg0: i32) -> (i32, i32) {
    %c0_i32 = arith.constant 0 : i32
    %c0_i32_0 = arith.constant 0 : i32
    %c0_i32_1 = arith.constant 0 : i32
    return %c0_i32, %c0_i32_0 : i32, i32
  }
  func.func @transform_2(%arg0: i32) -> (i32, i32) {
    %c0_i32 = arith.constant 0 : i32
    %c0_i32_0 = arith.constant 0 : i32
    %c0_i32_1 = arith.constant 0 : i32
    return %c0_i32, %c0_i32_0 : i32, i32
  }
  func.func @transform_3(%arg0: i32) -> (i32, i32) {
    %c0_i32 = arith.constant 0 : i32
    %c0_i32_0 = arith.constant 0 : i32
    %c0_i32_1 = arith.constant 0 : i32
    return %c0_i32, %c0_i32_0 : i32, i32
  }
  func.func @transform_4(%arg0: i32) -> (i32, i32) {
    %c0_i32 = arith.constant 0 : i32
    %c0_i32_0 = arith.constant 0 : i32
    %c0_i32_1 = arith.constant 0 : i32
    return %c0_i32, %c0_i32_0 : i32, i32
  }
  func.func @transform_5(%arg0: i32) -> (i32, i32) {
    %c0_i32 = arith.constant 0 : i32
    %c0_i32_0 = arith.constant 0 : i32
    %c0_i32_1 = arith.constant 0 : i32
    return %c0_i32, %c0_i32_0 : i32, i32
  }
  func.func @transform_6(%arg0: i32) -> (i32, i32) {
    %c0_i32 = arith.constant 0 : i32
    %c0_i32_0 = arith.constant 0 : i32
    %c0_i32_1 = arith.constant 0 : i32
    return %c0_i32, %c0_i32_0 : i32, i32
  }
  func.func @transform_7(%arg0: i32) -> (i32, i32) {
    %c0_i32 = arith.constant 0 : i32
    %c0_i32_0 = arith.constant 0 : i32
    %c0_i32_1 = arith.constant 0 : i32
    return %c0_i32, %c0_i32_0 : i32, i32
  }
  func.func @transform_8(%arg0: i32) -> (i32, i32) {
    %c0_i32 = arith.constant 0 : i32
    %c0_i32_0 = arith.constant 0 : i32
    %c0_i32_1 = arith.constant 0 : i32
    return %c0_i32, %c0_i32_0 : i32, i32
  }
  func.func @transform_9(%arg0: i32) -> (i32, i32) {
    %c0_i32 = arith.constant 0 : i32
    %c0_i32_0 = arith.constant 0 : i32
    return %arg0, %c0_i32 : i32, i32
  }
}

module attributes {stable_mosaic.version = 11 : i64} {
  func.func @_mlp_kernel(%arg0: i32, %arg1: memref<16x32xbf16, #tpu.memory_space<vmem>>, %arg2: memref<32x128xbf16, #tpu.memory_space<vmem>>, %arg3: memref<1x128xf32, #tpu.memory_space<vmem>>, %arg4: memref<128x32xbf16, #tpu.memory_space<vmem>>, %arg5: memref<1x32xf32, #tpu.memory_space<vmem>>, %arg6: memref<32x32xbf16, #tpu.memory_space<vmem>>, %arg7: memref<32x128xbf16, #tpu.memory_space<vmem>>, %arg8: memref<128x32xbf16, #tpu.memory_space<vmem>>, %arg9: memref<32x32xbf16, #tpu.memory_space<vmem>>, %arg10: memref<16x32xf32, #tpu.memory_space<vmem>>) attributes {dimension_semantics = [#tpu.dimension_semantics<parallel>], iteration_bounds = array<i64: 1>, scalar_prefetch = 0 : i64, scratch_operands = 0 : i64, tpu.core_type = #tpu.core_type<tc>, window_params = [{transform_indices = @transform_0, window_bounds = array<i64: 16, 32>}, {pipeline_mode = #tpu.pipeline_mode<synchronous>, transform_indices = @transform_1, window_bounds = array<i64: 32, 128>}, {pipeline_mode = #tpu.pipeline_mode<synchronous>, transform_indices = @transform_2, window_bounds = array<i64: 1, 128>}, {pipeline_mode = #tpu.pipeline_mode<synchronous>, transform_indices = @transform_3, window_bounds = array<i64: 128, 32>}, {pipeline_mode = #tpu.pipeline_mode<synchronous>, transform_indices = @transform_4, window_bounds = array<i64: 1, 32>}, {pipeline_mode = #tpu.pipeline_mode<synchronous>, transform_indices = @transform_5, window_bounds = array<i64: 32, 32>}, {pipeline_mode = #tpu.pipeline_mode<synchronous>, transform_indices = @transform_6, window_bounds = array<i64: 32, 128>}, {pipeline_mode = #tpu.pipeline_mode<synchronous>, transform_indices = @transform_7, window_bounds = array<i64: 128, 32>}, {pipeline_mode = #tpu.pipeline_mode<synchronous>, transform_indices = @transform_8, window_bounds = array<i64: 32, 32>}, {transform_indices = @transform_9, window_bounds = array<i64: 16, 32>}]} {
    %c0 = arith.constant 0 : index
    %c0_0 = arith.constant 0 : index
    %0 = vector.load %arg1[%c0, %c0_0] : memref<16x32xbf16, #tpu.memory_space<vmem>>, vector<16x32xbf16>
    %c0_1 = arith.constant 0 : index
    %c0_2 = arith.constant 0 : index
    %1 = vector.load %arg5[%c0_1, %c0_2] : memref<1x32xf32, #tpu.memory_space<vmem>>, vector<1x32xf32>
    %c0_3 = arith.constant 0 : index
    %c0_4 = arith.constant 0 : index
    %2 = vector.load %arg3[%c0_3, %c0_4] : memref<1x128xf32, #tpu.memory_space<vmem>>, vector<1x128xf32>
    %3 = vector.shape_cast %2 : vector<1x128xf32> to vector<1x128xf32>
    %4 = vector.broadcast %3 : vector<1x128xf32> to vector<16x128xf32>
    %c0_5 = arith.constant 0 : index
    %c0_6 = arith.constant 0 : index
    %5 = vector.load %arg2[%c0_5, %c0_6] : memref<32x128xbf16, #tpu.memory_space<vmem>>, vector<32x128xbf16>
    %cst = arith.constant dense<0.000000e+00> : vector<16x128xf32>
    %6 = tpu.matmul %0, %5, %cst {dimension_numbers = #tpu.dot_dimension_numbers<[1], [0], [0], [1], [0, 0, 1, 1], [], []>} : vector<16x32xbf16>, vector<32x128xbf16>, vector<16x128xf32> -> vector<16x128xf32>
    %7 = arith.addf %6, %4 : vector<16x128xf32>
    %8 = arith.truncf %7 : vector<16x128xf32> to vector<16x128xbf16>
    %cst_7 = arith.constant 5.000000e-01 : bf16
    %9 = vector.broadcast %cst_7 : bf16 to vector<16x128xbf16>
    %10 = arith.mulf %9, %8 : vector<16x128xbf16>
    %cst_8 = arith.constant 4.467770e-02 : bf16
    %11 = vector.broadcast %cst_8 : bf16 to vector<16x128xbf16>
    %12 = arith.mulf %11, %8 : vector<16x128xbf16>
    %13 = arith.mulf %12, %8 : vector<16x128xbf16>
    %14 = arith.mulf %13, %8 : vector<16x128xbf16>
    %15 = arith.addf %8, %14 : vector<16x128xbf16>
    %cst_9 = arith.constant 7.968750e-01 : bf16
    %16 = vector.broadcast %cst_9 : bf16 to vector<16x128xbf16>
    %17 = arith.mulf %16, %15 : vector<16x128xbf16>
    %18 = math.tanh %17 : vector<16x128xbf16>
    %cst_10 = arith.constant 1.000000e+00 : bf16
    %19 = vector.broadcast %cst_10 : bf16 to vector<16x128xbf16>
    %20 = arith.addf %19, %18 : vector<16x128xbf16>
    %21 = arith.mulf %10, %20 : vector<16x128xbf16>
    %c0_11 = arith.constant 0 : index
    %c0_12 = arith.constant 0 : index
    %22 = vector.load %arg4[%c0_11, %c0_12] : memref<128x32xbf16, #tpu.memory_space<vmem>>, vector<128x32xbf16>
    %cst_13 = arith.constant dense<0.000000e+00> : vector<16x32xf32>
    %23 = tpu.matmul %21, %22, %cst_13 {dimension_numbers = #tpu.dot_dimension_numbers<[1], [0], [0], [1], [0, 0, 1, 1], [], []>} : vector<16x128xbf16>, vector<128x32xbf16>, vector<16x32xf32> -> vector<16x32xf32>
    %c0_14 = arith.constant 0 : index
    %c0_15 = arith.constant 0 : index
    %24 = vector.load %arg6[%c0_14, %c0_15] : memref<32x32xbf16, #tpu.memory_space<vmem>>, vector<32x32xbf16>
    %cst_16 = arith.constant dense<0.000000e+00> : vector<16x32xf32>
    %25 = tpu.matmul %0, %24, %cst_16 {dimension_numbers = #tpu.dot_dimension_numbers<[1], [0], [0], [1], [0, 0, 1, 1], [], []>} : vector<16x32xbf16>, vector<32x32xbf16>, vector<16x32xf32> -> vector<16x32xf32>
    %26 = arith.truncf %25 : vector<16x32xf32> to vector<16x32xbf16>
    %c0_17 = arith.constant 0 : index
    %c0_18 = arith.constant 0 : index
    %27 = vector.load %arg7[%c0_17, %c0_18] : memref<32x128xbf16, #tpu.memory_space<vmem>>, vector<32x128xbf16>
    %cst_19 = arith.constant dense<0.000000e+00> : vector<16x128xf32>
    %28 = tpu.matmul %26, %27, %cst_19 {dimension_numbers = #tpu.dot_dimension_numbers<[1], [0], [0], [1], [0, 0, 1, 1], [], []>} : vector<16x32xbf16>, vector<32x128xbf16>, vector<16x128xf32> -> vector<16x128xf32>
    %29 = arith.addf %28, %4 : vector<16x128xf32>
    %30 = arith.truncf %29 : vector<16x128xf32> to vector<16x128xbf16>
    %cst_20 = arith.constant 5.000000e-01 : bf16
    %31 = vector.broadcast %cst_20 : bf16 to vector<16x128xbf16>
    %32 = arith.mulf %31, %30 : vector<16x128xbf16>
    %cst_21 = arith.constant 4.467770e-02 : bf16
    %33 = vector.broadcast %cst_21 : bf16 to vector<16x128xbf16>
    %34 = arith.mulf %33, %30 : vector<16x128xbf16>
    %35 = arith.mulf %34, %30 : vector<16x128xbf16>
    %36 = arith.mulf %35, %30 : vector<16x128xbf16>
    %37 = arith.addf %30, %36 : vector<16x128xbf16>
    %cst_22 = arith.constant 7.968750e-01 : bf16
    %38 = vector.broadcast %cst_22 : bf16 to vector<16x128xbf16>
    %39 = arith.mulf %38, %37 : vector<16x128xbf16>
    %40 = math.tanh %39 : vector<16x128xbf16>
    %cst_23 = arith.constant 1.000000e+00 : bf16
    %41 = vector.broadcast %cst_23 : bf16 to vector<16x128xbf16>
    %42 = arith.addf %41, %40 : vector<16x128xbf16>
    %43 = arith.mulf %32, %42 : vector<16x128xbf16>
    %c0_24 = arith.constant 0 : index
    %c0_25 = arith.constant 0 : index
    %44 = vector.load %arg8[%c0_24, %c0_25] : memref<128x32xbf16, #tpu.memory_space<vmem>>, vector<128x32xbf16>
    %cst_26 = arith.constant dense<0.000000e+00> : vector<16x32xf32>
    %45 = tpu.matmul %43, %44, %cst_26 {dimension_numbers = #tpu.dot_dimension_numbers<[1], [0], [0], [1], [0, 0, 1, 1], [], []>} : vector<16x128xbf16>, vector<128x32xbf16>, vector<16x32xf32> -> vector<16x32xf32>
    %46 = arith.truncf %45 : vector<16x32xf32> to vector<16x32xbf16>
    %c0_27 = arith.constant 0 : index
    %c0_28 = arith.constant 0 : index
    %47 = vector.load %arg9[%c0_27, %c0_28] : memref<32x32xbf16, #tpu.memory_space<vmem>>, vector<32x32xbf16>
    %cst_29 = arith.constant dense<0.000000e+00> : vector<16x32xf32>
    %48 = tpu.matmul %46, %47, %cst_29 {dimension_numbers = #tpu.dot_dimension_numbers<[1], [0], [0], [1], [0, 0, 1, 1], [], []>} : vector<16x32xbf16>, vector<32x32xbf16>, vector<16x32xf32> -> vector<16x32xf32>
    %49 = arith.addf %23, %48 : vector<16x32xf32>
    %50 = vector.broadcast %1 : vector<1x32xf32> to vector<16x32xf32>
    %51 = arith.addf %49, %50 : vector<16x32xf32>
    %c0_30 = arith.constant 0 : index
    %c0_31 = arith.constant 0 : index
    %52 = vector.load %arg10[%c0_30, %c0_31] : memref<16x32xf32, #tpu.memory_space<vmem>>, vector<16x32xf32>
    tpu.vector_store %arg10[%c0_30, %c0_31], %51 {strides = array<i32>} : memref<16x32xf32, #tpu.memory_space<vmem>>, vector<16x32xf32>,
    return
  }
  func.func @transform_0(%arg0: i32) -> (i32, i32) {
    %c0_i32 = arith.constant 0 : i32
    %c0_i32_0 = arith.constant 0 : i32
    return %arg0, %c0_i32 : i32, i32
  }
  func.func @transform_1(%arg0: i32) -> (i32, i32) {
    %c0_i32 = arith.constant 0 : i32
    %c0_i32_0 = arith.constant 0 : i32
    %c0_i32_1 = arith.constant 0 : i32
    return %c0_i32, %c0_i32_0 : i32, i32
  }
  func.func @transform_2(%arg0: i32) -> (i32, i32) {
    %c0_i32 = arith.constant 0 : i32
    %c0_i32_0 = arith.constant 0 : i32
    %c0_i32_1 = arith.constant 0 : i32
    return %c0_i32, %c0_i32_0 : i32, i32
  }
  func.func @transform_3(%arg0: i32) -> (i32, i32) {
    %c0_i32 = arith.constant 0 : i32
    %c0_i32_0 = arith.constant 0 : i32
    %c0_i32_1 = arith.constant 0 : i32
    return %c0_i32, %c0_i32_0 : i32, i32
  }
  func.func @transform_4(%arg0: i32) -> (i32, i32) {
    %c0_i32 = arith.constant 0 : i32
    %c0_i32_0 = arith.constant 0 : i32
    %c0_i32_1 = arith.constant 0 : i32
    return %c0_i32, %c0_i32_0 : i32, i32
  }
  func.func @transform_5(%arg0: i32) -> (i32, i32) {
    %c0_i32 = arith.constant 0 : i32
    %c0_i32_0 = arith.constant 0 : i32
    %c0_i32_1 = arith.constant 0 : i32
    return %c0_i32, %c0_i32_0 : i32, i32
  }
  func.func @transform_6(%arg0: i32) -> (i32, i32) {
    %c0_i32 = arith.constant 0 : i32
    %c0_i32_0 = arith.constant 0 : i32
    %c0_i32_1 = arith.constant 0 : i32
    return %c0_i32, %c0_i32_0 : i32, i32
  }
  func.func @transform_7(%arg0: i32) -> (i32, i32) {
    %c0_i32 = arith.constant 0 : i32
    %c0_i32_0 = arith.constant 0 : i32
    %c0_i32_1 = arith.constant 0 : i32
    return %c0_i32, %c0_i32_0 : i32, i32
  }
  func.func @transform_8(%arg0: i32) -> (i32, i32) {
    %c0_i32 = arith.constant 0 : i32
    %c0_i32_0 = arith.constant 0 : i32
    %c0_i32_1 = arith.constant 0 : i32
    return %c0_i32, %c0_i32_0 : i32, i32
  }
  func.func @transform_9(%arg0: i32) -> (i32, i32) {
    %c0_i32 = arith.constant 0 : i32
    %c0_i32_0 = arith.constant 0 : i32
    return %arg0, %c0_i32 : i32, i32
  }
}

</mosaic_0001>

<llo_original>
// kernel: tpu_custom_call.1
$region0: #{tpu_custom_call.1}
  #allocation0 [shape = 'u32[]', space=smem, size = 0x4, offset = 0x4, fixed_abs, tag = 'smem constant byte address 0x4 - core index']
  #allocation1 [shape = 'u32[144,128]{1,0:T(1,128)}', space=vmem, size = 0x12000, scoped, tag = 'internal scratch']
  %s0 = inlined_call_operand.vmem [shape: bf16[16,32], index: 0, kind: input, shape index: {}]
  %s1 = inlined_call_operand.vmem [shape: bf16[32,128], index: 1, kind: input, shape index: {}]
  %s2 = inlined_call_operand.vmem [shape: f32[1,128], index: 2, kind: input, shape index: {}]
  %s3 = inlined_call_operand.vmem [shape: bf16[128,32], index: 3, kind: input, shape index: {}]
  %s4 = inlined_call_operand.vmem [shape: f32[1,32], index: 4, kind: input, shape index: {}]
  %s5 = inlined_call_operand.vmem [shape: bf16[32,32], index: 5, kind: input, shape index: {}]
  %s6 = inlined_call_operand.vmem [shape: bf16[32,128], index: 6, kind: input, shape index: {}]
  %s7 = inlined_call_operand.vmem [shape: bf16[128,32], index: 7, kind: input, shape index: {}]
  %s8 = inlined_call_operand.vmem [shape: bf16[32,32], index: 8, kind: input, shape index: {}]
  %s9 = inlined_call_operand.hbm [shape: f32[16,32], index: 9, kind: output, shape index: {}]
  %s10 = sld [smem:[#allocation0]]
  $region46: #{tpu_custom_call.1} parent=0
    _
  %s12 = ssub.s32 1, %s10
  %s13 = scalar_select 0, %s12, %s10
  $region1: #{tpu_custom_call.1} parent=0
    #allocation2 [shape = 'u8[8192]{0}', space=vmem, size = 0x2000, scoped, tag = 'output window, operand 0, single buffered']
    #allocation3 [shape = 's32[1]{0}', space=sflag, size = 0x4, scoped, tag = 'scoped memory for tpu_custom_call.1']
    %14 = vsyncpa [#allocation3], 0
    // Predicated region
    $region2: #{tpu_custom_call.1} parent=1 // pred_check
      _
    $region3: #{tpu_custom_call.1} parent=1 // pred_check_branch
      %16 = sbr.rel (0) target = $region5
    $region4: #{tpu_custom_call.1} parent=1 // pred_region
      _
    $region5: #{tpu_custom_call.1} parent=1 // pred_fallthru
      _
    // Predicated region
    $region6: #{tpu_custom_call.1} parent=1 // pred_check
      _
    $region7: #{tpu_custom_call.1} parent=1 // pred_check_branch
      %18 = sbr.rel (0) target = $region9
    $region8: #{tpu_custom_call.1} parent=1 // pred_region
      _
    $region9: #{tpu_custom_call.1} parent=1 // pred_fallthru
      _
    // Predicated region
    $region10: #{tpu_custom_call.1} parent=1 // pred_check
      _
    $region11: #{tpu_custom_call.1} parent=1 // pred_check_branch
      %20 = sbr.rel (0) target = $region13
    $region12: #{tpu_custom_call.1} parent=1 // pred_region
      _
    $region13: #{tpu_custom_call.1} parent=1 // pred_fallthru
      _
    // Predicated region
    $region14: #{tpu_custom_call.1} parent=1 // pred_check
      _
    $region15: #{tpu_custom_call.1} parent=1 // pred_check_branch
      %22 = sbr.rel (0) target = $region17
    $region16: #{tpu_custom_call.1} parent=1 // pred_region
      _
    $region17: #{tpu_custom_call.1} parent=1 // pred_fallthru
      _
    // Predicated region
    $region18: #{tpu_custom_call.1} parent=1 // pred_check
      _
    $region19: #{tpu_custom_call.1} parent=1 // pred_check_branch
      %24 = sbr.rel (0) target = $region21
    $region20: #{tpu_custom_call.1} parent=1 // pred_region
      _
    $region21: #{tpu_custom_call.1} parent=1 // pred_fallthru
      _
    // Predicated region
    $region22: #{tpu_custom_call.1} parent=1 // pred_check
      _
    $region23: #{tpu_custom_call.1} parent=1 // pred_check_branch
      %26 = sbr.rel (0) target = $region25
    $region24: #{tpu_custom_call.1} parent=1 // pred_region
      _
    $region25: #{tpu_custom_call.1} parent=1 // pred_fallthru
      _
    // Predicated region
    $region26: #{tpu_custom_call.1} parent=1 // pred_check
      _
    $region27: #{tpu_custom_call.1} parent=1 // pred_check_branch
      %28 = sbr.rel (0) target = $region29
    $region28: #{tpu_custom_call.1} parent=1 // pred_region
      _
    $region29: #{tpu_custom_call.1} parent=1 // pred_fallthru
      _
    // Predicated region
    $region30: #{tpu_custom_call.1} parent=1 // pred_check
      _
    $region31: #{tpu_custom_call.1} parent=1 // pred_check_branch
      %30 = sbr.rel (0) target = $region33
    $region32: #{tpu_custom_call.1} parent=1 // pred_region
      _
    $region33: #{tpu_custom_call.1} parent=1 // pred_fallthru
      _
    // Predicated region
    $region34: #{tpu_custom_call.1} parent=1 // pred_check
      _
    $region35: #{tpu_custom_call.1} parent=1 // pred_check_branch
      %32 = sbr.rel (0) target = $region37
    $region36: #{tpu_custom_call.1} parent=1 // pred_region
      _
    $region37: #{tpu_custom_call.1} parent=1 // pred_fallthru
      _
    %v38 = vld [vmem:[%s0] sm:$0xf]
    %v39 = vld [vmem:[%s0 + $0x4] sm:$0xf]
    %v40 = vld [vmem:[%s4] sm:$0x1]
    %v41 = vld [vmem:[%s2] sm:$0x1]
    %v43 = vlaneseq
    %v44 = vshrl.u32 %v43, 7
    %v45 = vsub.s32 0, %v44
    %v46 = vrot.slane %v41, %v45
    %v48 = vld [vmem:[%s1] sm:$0xf]
    %v49 = vld [vmem:[%s1 + $0x4] sm:$0xf]
    %v50 = vld [vmem:[%s1 + $0x8] sm:$0xf]
    %v51 = vld [vmem:[%s1 + $0xc] sm:$0xf]
    %v54 = vunpack.c.l.b16 %v38
    %v55 = vunpack.c.l.b16 %v39
    %v56 = vpack.c.b16 %v55, %v54
    %v61 = vunpack.c.l.b16 %v48
    %v62 = vunpack.c.l.b16 %v49
    %v63 = vunpack.c.l.b16 %v50
    %v64 = vunpack.c.l.b16 %v51
    %v65 = vpack.c.b16 %v62, %v61
    %v66 = vpack.c.b16 %v64, %v63
    %vm69 = vcmask 261120
    %v71 = vsel %vm69, %v56, 0
    %73 = vmatprep.subr.bf16.mxu0 0
    %74 = vmatpush1.bf16.msra.mxu0 0
    %75 = vmatprep.subr.bf16.mxu0 0
    %76 = vmatpush1.bf16.msra.mxu0 0
    %77 = vmatprep.subr.bf16.mxu0 0
    %78 = vmatpush1.bf16.msra.mxu0 0
    %79 = vmatprep.subr.bf16.mxu0 0
    %80 = vmatpush1.bf16.msra.mxu0 0
    %81 = vmatprep.subr.bf16.mxu0 0
    %82 = vmatpush1.bf16.msra.mxu0 0
    %83 = vmatprep.subr.bf16.mxu0 0
    %84 = vmatpush1.bf16.msra.mxu0 0
    %85 = vmatprep.subr.bf16.mxu0 0
    %86 = vmatpush1.bf16.msra.mxu0 %v66
    %87 = vmatprep.subr.bf16.mxu0 0
    %88 = vmatpush1.bf16.msra.mxu0 %v65
    %89 = vmatprep.subr.bf16.mxu0 0
    %90 = vmatpush2.bf16.msra.mxu0 0
    %91 = vmatprep.subr.bf16.mxu0 0
    %92 = vmatpush2.bf16.msra.mxu0 0
    %93 = vmatprep.subr.bf16.mxu0 0
    %94 = vmatpush2.bf16.msra.mxu0 0
    %95 = vmatprep.subr.bf16.mxu0 0
    %96 = vmatpush2.bf16.msra.mxu0 0
    %97 = vmatprep.subr.bf16.mxu0 0
    %98 = vmatpush2.bf16.msra.mxu0 0
    %99 = vmatprep.subr.bf16.mxu0 0
    %100 = vmatpush2.bf16.msra.mxu0 0
    %101 = vmatprep.subr.bf16.mxu0 0
    %102 = vmatpush2.bf16.msra.mxu0 0
    %103 = vmatprep.subr.bf16.mxu0 0
    %104 = vmatpush2.bf16.msra.mxu0 0
    %105 = vmatprep.mubr.bf16.mxu0 0
    %106 = vmatmul.mubr.bf16.gmra.mxu0 %v71
    %v107 = vpop.f32.mrf.mxu0
    %v108 = vadd.f32 %v46, %v107
    %v109 = vpop.f32.mrf.mxu0
    %v110 = vpop.f32.mrf.mxu0
    %v111 = vadd.f32 %v46, %v110
    %v112 = vpop.f32.mrf.mxu0
    %113 = vdwg.mxu0
    %v114 = vpack.c.bf16 %v111, %v108
    %v115 = vmul.bf16 %v114, 1056980736
    %v116 = vmul.bf16 %v114, 1027030327
    %v117 = vmul.bf16 %v116, %v114
    %v118 = vmul.bf16 %v117, %v114
    %v119 = vadd.bf16 %v114, %v118
    %v120 = vmul.bf16 %v119, 1061961548
    %v121 = vtanh.bf16.pop %v120
    %v122 = vadd.bf16 %v121, 1065369472
    %v123 = vmul.bf16 %v115, %v122
    %v124 = vld [vmem:[%s3] sm:$0xf]
    %v125 = vld [vmem:[%s3 + $0x4] sm:$0xf]
    %v126 = vld [vmem:[%s3 + $0x8] sm:$0xf]
    %v127 = vld [vmem:[%s3 + $0xc] sm:$0xf]
    %v128 = vld [vmem:[%s3 + $0x10] sm:$0xf]
    %v129 = vld [vmem:[%s3 + $0x14] sm:$0xf]
    %v130 = vld [vmem:[%s3 + $0x18] sm:$0xf]
    %v131 = vld [vmem:[%s3 + $0x1c] sm:$0xf]
    %v132 = vld [vmem:[%s3 + $0x20] sm:$0xf]
    %v133 = vld [vmem:[%s3 + $0x24] sm:$0xf]
    %v134 = vld [vmem:[%s3 + $0x28] sm:$0xf]
    %v135 = vld [vmem:[%s3 + $0x2c] sm:$0xf]
    %v136 = vld [vmem:[%s3 + $0x30] sm:$0xf]
    %v137 = vld [vmem:[%s3 + $0x34] sm:$0xf]
    %v138 = vld [vmem:[%s3 + $0x38] sm:$0xf]
    %v139 = vld [vmem:[%s3 + $0x3c] sm:$0xf]
    %v140 = vld [vmem:[%s5] sm:$0xf]
    %v141 = vld [vmem:[%s5 + $0x4] sm:$0xf]
    %v142 = vld [vmem:[%s5 + $0x8] sm:$0xf]
    %v143 = vld [vmem:[%s5 + $0xc] sm:$0xf]
    %v148 = vunpack.c.l.b16 %v140
    %v149 = vunpack.c.l.b16 %v141
    %v150 = vunpack.c.l.b16 %v142
    %v151 = vunpack.c.l.b16 %v143
    %v152 = vpack.c.b16 %v149, %v148
    %v153 = vpack.c.b16 %v151, %v150
    %156 = vmatprep.subr.bf16.mxu0 0
    %157 = vmatpush1.bf16.msra.mxu0 0
    %158 = vmatprep.subr.bf16.mxu0 0
    %159 = vmatpush1.bf16.msra.mxu0 0
    %160 = vmatprep.subr.bf16.mxu0 0
    %161 = vmatpush1.bf16.msra.mxu0 0
    %162 = vmatprep.subr.bf16.mxu0 0
    %163 = vmatpush1.bf16.msra.mxu0 0
    %164 = vmatprep.subr.bf16.mxu0 0
    %165 = vmatpush1.bf16.msra.mxu0 0
    %166 = vmatprep.subr.bf16.mxu0 0
    %167 = vmatpush1.bf16.msra.mxu0 0
    %168 = vmatprep.subr.bf16.mxu0 0
    %169 = vmatpush1.bf16.msra.mxu0 %v153
    %170 = vmatprep.subr.bf16.mxu0 0
    %171 = vmatpush1.bf16.msra.mxu0 %v152
    %172 = vmatprep.subr.bf16.mxu0 0
    %173 = vmatpush2.bf16.msra.mxu0 0
    %174 = vmatprep.subr.bf16.mxu0 0
    %175 = vmatpush2.bf16.msra.mxu0 0
    %176 = vmatprep.subr.bf16.mxu0 0
    %177 = vmatpush2.bf16.msra.mxu0 0
    %178 = vmatprep.subr.bf16.mxu0 0
    %179 = vmatpush2.bf16.msra.mxu0 0
    %180 = vmatprep.subr.bf16.mxu0 0
    %181 = vmatpush2.bf16.msra.mxu0 0
    %182 = vmatprep.subr.bf16.mxu0 0
    %183 = vmatpush2.bf16.msra.mxu0 0
    %184 = vmatprep.subr.bf16.mxu0 0
    %185 = vmatpush2.bf16.msra.mxu0 0
    %186 = vmatprep.subr.bf16.mxu0 0
    %187 = vmatpush2.bf16.msra.mxu0 0
    %188 = vmatprep.mubr.bf16.mxu0 0
    %189 = vmatmul.mubr.bf16.gmra.mxu0 %v71
    %v190 = vpop.f32.mrf.mxu0
    %v191 = vadd.f32 0.0, %v190
    %v192 = vpop.f32.mrf.mxu0
    %v193 = vpop.f32.mrf.mxu0
    %v194 = vadd.f32 0.0, %v193
    %v195 = vpop.f32.mrf.mxu0
    %196 = vdwg.mxu0
    %v197 = vpack.c.bf16 %v194, %v191
    %v198 = vld [vmem:[%s6] sm:$0xf]
    %v199 = vld [vmem:[%s6 + $0x4] sm:$0xf]
    %v200 = vld [vmem:[%s6 + $0x8] sm:$0xf]
    %v201 = vld [vmem:[%s6 + $0xc] sm:$0xf]
    %v206 = vunpack.c.l.b16 %v198
    %v207 = vunpack.c.l.b16 %v199
    %v208 = vunpack.c.l.b16 %v200
    %v209 = vunpack.c.l.b16 %v201
    %v210 = vpack.c.b16 %v207, %v206
    %v211 = vpack.c.b16 %v209, %v208
    %v215 = vsel %vm69, %v197, 0
    %217 = vmatprep.subr.bf16.mxu0 0
    %218 = vmatpush1.bf16.msra.mxu0 0
    %219 = vmatprep.subr.bf16.mxu0 0
    %220 = vmatpush1.bf16.msra.mxu0 0
    %221 = vmatprep.subr.bf16.mxu0 0
    %222 = vmatpush1.bf16.msra.mxu0 0
    %223 = vmatprep.subr.bf16.mxu0 0
    %224 = vmatpush1.bf16.msra.mxu0 0
    %225 = vmatprep.subr.bf16.mxu0 0
    %226 = vmatpush1.bf16.msra.mxu0 0
    %227 = vmatprep.subr.bf16.mxu0 0
    %228 = vmatpush1.bf16.msra.mxu0 0
    %229 = vmatprep.subr.bf16.mxu0 0
    %230 = vmatpush1.bf16.msra.mxu0 %v211
    %231 = vmatprep.subr.bf16.mxu0 0
    %232 = vmatpush1.bf16.msra.mxu0 %v210
    %233 = vmatprep.subr.bf16.mxu0 0
    %234 = vmatpush2.bf16.msra.mxu0 0
    %235 = vmatprep.subr.bf16.mxu0 0
    %236 = vmatpush2.bf16.msra.mxu0 0
    %237 = vmatprep.subr.bf16.mxu0 0
    %238 = vmatpush2.bf16.msra.mxu0 0
    %239 = vmatprep.subr.bf16.mxu0 0
    %240 = vmatpush2.bf16.msra.mxu0 0
    %241 = vmatprep.subr.bf16.mxu0 0
    %242 = vmatpush2.bf16.msra.mxu0 0
    %243 = vmatprep.subr.bf16.mxu0 0
    %244 = vmatpush2.bf16.msra.mxu0 0
    %245 = vmatprep.subr.bf16.mxu0 0
    %246 = vmatpush2.bf16.msra.mxu0 0
    %247 = vmatprep.subr.bf16.mxu0 0
    %248 = vmatpush2.bf16.msra.mxu0 0
    %249 = vmatprep.mubr.bf16.mxu0 0
    %250 = vmatmul.mubr.bf16.gmra.mxu0 %v215
    %v251 = vpop.f32.mrf.mxu0
    %v252 = vadd.f32 %v46, %v251
    %v253 = vpop.f32.mrf.mxu0
    %v254 = vpop.f32.mrf.mxu0
    %v255 = vadd.f32 %v46, %v254
    %v256 = vpop.f32.mrf.mxu0
    %257 = vdwg.mxu0
    %v258 = vpack.c.bf16 %v255, %v252
    %v259 = vmul.bf16 %v258, 1056980736
    %v260 = vmul.bf16 %v258, 1027030327
    %v261 = vmul.bf16 %v260, %v258
    %v262 = vmul.bf16 %v261, %v258
    %v263 = vadd.bf16 %v258, %v262
    %v264 = vmul.bf16 %v263, 1061961548
    %v265 = vtanh.bf16.pop %v264
    %v266 = vadd.bf16 %v265, 1065369472
    %v267 = vmul.bf16 %v259, %v266
    %v268 = vld [vmem:[%s7] sm:$0xf]
    %v269 = vld [vmem:[%s7 + $0x4] sm:$0xf]
    %v270 = vld [vmem:[%s7 + $0x8] sm:$0xf]
    %v271 = vld [vmem:[%s7 + $0xc] sm:$0xf]
    %v272 = vld [vmem:[%s7 + $0x10] sm:$0xf]
    %v273 = vld [vmem:[%s7 + $0x14] sm:$0xf]
    %v274 = vld [vmem:[%s7 + $0x18] sm:$0xf]
    %v275 = vld [vmem:[%s7 + $0x1c] sm:$0xf]
    %v276 = vld [vmem:[%s7 + $0x20] sm:$0xf]
    %v277 = vld [vmem:[%s7 + $0x24] sm:$0xf]
    %v278 = vld [vmem:[%s7 + $0x28] sm:$0xf]
    %v279 = vld [vmem:[%s7 + $0x2c] sm:$0xf]
    %v280 = vld [vmem:[%s7 + $0x30] sm:$0xf]
    %v281 = vld [vmem:[%s7 + $0x34] sm:$0xf]
    %v282 = vld [vmem:[%s7 + $0x38] sm:$0xf]
    %v283 = vld [vmem:[%s7 + $0x3c] sm:$0xf]
    %v300 = vunpack.c.l.b16 %v268
    %v301 = vunpack.c.l.b16 %v269
    %v302 = vunpack.c.l.b16 %v270
    %v303 = vunpack.c.l.b16 %v271
    %v304 = vunpack.c.l.b16 %v272
    %v305 = vunpack.c.l.b16 %v273
    %v306 = vunpack.c.l.b16 %v274
    %v307 = vunpack.c.l.b16 %v275
    %v308 = vunpack.c.l.b16 %v276
    %v309 = vunpack.c.l.b16 %v277
    %v310 = vunpack.c.l.b16 %v278
    %v311 = vunpack.c.l.b16 %v279
    %v312 = vunpack.c.l.b16 %v280
    %v313 = vunpack.c.l.b16 %v281
    %v314 = vunpack.c.l.b16 %v282
    %v315 = vunpack.c.l.b16 %v283
    %v316 = vpack.c.b16 %v301, %v300
    %v317 = vpack.c.b16 %v303, %v302
    %v318 = vpack.c.b16 %v305, %v304
    %v319 = vpack.c.b16 %v307, %v306
    %v320 = vpack.c.b16 %v309, %v308
    %v321 = vpack.c.b16 %v311, %v310
    %v322 = vpack.c.b16 %v313, %v312
    %v323 = vpack.c.b16 %v315, %v314
    %332 = vmatprep.subr.bf16.mxu0 0
    %333 = vmatpush1.bf16.msra.mxu0 %v323
    %334 = vmatprep.subr.bf16.mxu0 0
    %335 = vmatpush1.bf16.msra.mxu0 %v322
    %336 = vmatprep.subr.bf16.mxu0 0
    %337 = vmatpush1.bf16.msra.mxu0 %v321
    %338 = vmatprep.subr.bf16.mxu0 0
    %339 = vmatpush1.bf16.msra.mxu0 %v320
    %340 = vmatprep.subr.bf16.mxu0 0
    %341 = vmatpush1.bf16.msra.mxu0 %v319
    %342 = vmatprep.subr.bf16.mxu0 0
    %343 = vmatpush1.bf16.msra.mxu0 %v318
    %344 = vmatprep.subr.bf16.mxu0 0
    %345 = vmatpush1.bf16.msra.mxu0 %v317
    %346 = vmatprep.subr.bf16.mxu0 0
    %347 = vmatpush1.bf16.msra.mxu0 %v316
    %348 = vmatprep.subr.bf16.mxu0 0
    %349 = vmatpush2.bf16.msra.mxu0 0
    %350 = vmatprep.subr.bf16.mxu0 0
    %351 = vmatpush2.bf16.msra.mxu0 0
    %352 = vmatprep.subr.bf16.mxu0 0
    %353 = vmatpush2.bf16.msra.mxu0 0
    %354 = vmatprep.subr.bf16.mxu0 0
    %355 = vmatpush2.bf16.msra.mxu0 0
    %356 = vmatprep.subr.bf16.mxu0 0
    %357 = vmatpush2.bf16.msra.mxu0 0
    %358 = vmatprep.subr.bf16.mxu0 0
    %359 = vmatpush2.bf16.msra.mxu0 0
    %360 = vmatprep.subr.bf16.mxu0 0
    %361 = vmatpush2.bf16.msra.mxu0 0
    %362 = vmatprep.subr.bf16.mxu0 0
    %363 = vmatpush2.bf16.msra.mxu0 0
    %364 = vmatprep.mubr.bf16.mxu0 0
    %365 = vmatmul.mubr.bf16.gmra.mxu0 %v267
    %v366 = vpop.f32.mrf.mxu0
    %v367 = vadd.f32 0.0, %v366
    %v368 = vpop.f32.mrf.mxu0
    %v369 = vpop.f32.mrf.mxu0
    %v370 = vadd.f32 0.0, %v369
    %v371 = vpop.f32.mrf.mxu0
    %372 = vdwg.mxu0
    %v373 = vpack.c.bf16 %v370, %v367
    %v374 = vld [vmem:[%s8] sm:$0xf]
    %v375 = vld [vmem:[%s8 + $0x4] sm:$0xf]
    %v376 = vld [vmem:[%s8 + $0x8] sm:$0xf]
    %v377 = vld [vmem:[%s8 + $0xc] sm:$0xf]
    %v382 = vunpack.c.l.b16 %v374
    %v383 = vunpack.c.l.b16 %v375
    %v384 = vunpack.c.l.b16 %v376
    %v385 = vunpack.c.l.b16 %v377
    %v386 = vpack.c.b16 %v383, %v382
    %v387 = vpack.c.b16 %v385, %v384
    %v391 = vsel %vm69, %v373, 0
    %393 = vmatprep.subr.bf16.mxu0 0
    %394 = vmatpush1.bf16.msra.mxu0 0
    %395 = vmatprep.subr.bf16.mxu0 0
    %396 = vmatpush1.bf16.msra.mxu0 0
    %397 = vmatprep.subr.bf16.mxu0 0
    %398 = vmatpush1.bf16.msra.mxu0 0
    %399 = vmatprep.subr.bf16.mxu0 0
    %400 = vmatpush1.bf16.msra.mxu0 0
    %401 = vmatprep.subr.bf16.mxu0 0
    %402 = vmatpush1.bf16.msra.mxu0 0
    %403 = vmatprep.subr.bf16.mxu0 0
    %404 = vmatpush1.bf16.msra.mxu0 0
    %405 = vmatprep.subr.bf16.mxu0 0
    %406 = vmatpush1.bf16.msra.mxu0 %v387
    %407 = vmatprep.subr.bf16.mxu0 0
    %408 = vmatpush1.bf16.msra.mxu0 %v386
    %409 = vmatprep.subr.bf16.mxu0 0
    %410 = vmatpush2.bf16.msra.mxu0 0
    %411 = vmatprep.subr.bf16.mxu0 0
    %412 = vmatpush2.bf16.msra.mxu0 0
    %413 = vmatprep.subr.bf16.mxu0 0
    %414 = vmatpush2.bf16.msra.mxu0 0
    %415 = vmatprep.subr.bf16.mxu0 0
    %416 = vmatpush2.bf16.msra.mxu0 0
    %417 = vmatprep.subr.bf16.mxu0 0
    %418 = vmatpush2.bf16.msra.mxu0 0
    %419 = vmatprep.subr.bf16.mxu0 0
    %420 = vmatpush2.bf16.msra.mxu0 0
    %421 = vmatprep.subr.bf16.mxu0 0
    %422 = vmatpush2.bf16.msra.mxu0 0
    %423 = vmatprep.subr.bf16.mxu0 0
    %424 = vmatpush2.bf16.msra.mxu0 0
    %425 = vmatprep.mubr.bf16.mxu0 0
    %426 = vmatmul.mubr.bf16.gmra.mxu0 %v391
    %v427 = vpop.f32.mrf.mxu0
    %v428 = vadd.f32 0.0, %v427
    %v429 = vpop.f32.mrf.mxu0
    %v430 = vpop.f32.mrf.mxu0
    %v431 = vadd.f32 0.0, %v430
    %v432 = vpop.f32.mrf.mxu0
    %433 = vdwg.mxu0
    %v450 = vunpack.c.l.b16 %v124
    %v451 = vunpack.c.l.b16 %v125
    %v452 = vunpack.c.l.b16 %v126
    %v453 = vunpack.c.l.b16 %v127
    %v454 = vunpack.c.l.b16 %v128
    %v455 = vunpack.c.l.b16 %v129
    %v456 = vunpack.c.l.b16 %v130
    %v457 = vunpack.c.l.b16 %v131
    %v458 = vunpack.c.l.b16 %v132
    %v459 = vunpack.c.l.b16 %v133
    %v460 = vunpack.c.l.b16 %v134
    %v461 = vunpack.c.l.b16 %v135
    %v462 = vunpack.c.l.b16 %v136
    %v463 = vunpack.c.l.b16 %v137
    %v464 = vunpack.c.l.b16 %v138
    %v465 = vunpack.c.l.b16 %v139
    %v466 = vpack.c.b16 %v451, %v450
    %v467 = vpack.c.b16 %v453, %v452
    %v468 = vpack.c.b16 %v455, %v454
    %v469 = vpack.c.b16 %v457, %v456
    %v470 = vpack.c.b16 %v459, %v458
    %v471 = vpack.c.b16 %v461, %v460
    %v472 = vpack.c.b16 %v463, %v462
    %v473 = vpack.c.b16 %v465, %v464
    %482 = vmatprep.subr.bf16.mxu0 0
    %483 = vmatpush1.bf16.msra.mxu0 %v473
    %484 = vmatprep.subr.bf16.mxu0 0
    %485 = vmatpush1.bf16.msra.mxu0 %v472
    %486 = vmatprep.subr.bf16.mxu0 0
    %487 = vmatpush1.bf16.msra.mxu0 %v471
    %488 = vmatprep.subr.bf16.mxu0 0
    %489 = vmatpush1.bf16.msra.mxu0 %v470
    %490 = vmatprep.subr.bf16.mxu0 0
    %491 = vmatpush1.bf16.msra.mxu0 %v469
    %492 = vmatprep.subr.bf16.mxu0 0
    %493 = vmatpush1.bf16.msra.mxu0 %v468
    %494 = vmatprep.subr.bf16.mxu0 0
    %495 = vmatpush1.bf16.msra.mxu0 %v467
    %496 = vmatprep.subr.bf16.mxu0 0
    %497 = vmatpush1.bf16.msra.mxu0 %v466
    %498 = vmatprep.subr.bf16.mxu0 0
    %499 = vmatpush2.bf16.msra.mxu0 0
    %500 = vmatprep.subr.bf16.mxu0 0
    %501 = vmatpush2.bf16.msra.mxu0 0
    %502 = vmatprep.subr.bf16.mxu0 0
    %503 = vmatpush2.bf16.msra.mxu0 0
    %504 = vmatprep.subr.bf16.mxu0 0
    %505 = vmatpush2.bf16.msra.mxu0 0
    %506 = vmatprep.subr.bf16.mxu0 0
    %507 = vmatpush2.bf16.msra.mxu0 0
    %508 = vmatprep.subr.bf16.mxu0 0
    %509 = vmatpush2.bf16.msra.mxu0 0
    %510 = vmatprep.subr.bf16.mxu0 0
    %511 = vmatpush2.bf16.msra.mxu0 0
    %512 = vmatprep.subr.bf16.mxu0 0
    %513 = vmatpush2.bf16.msra.mxu0 0
    %514 = vmatprep.mubr.bf16.mxu0 0
    %515 = vmatmul.mubr.bf16.gmra.mxu0 %v123
    %v516 = vpop.f32.mrf.mxu0
    %v517 = vadd.f32 %v428, %v516
    %v518 = vpop.f32.mrf.mxu0
    %v519 = vpop.f32.mrf.mxu0
    %v520 = vadd.f32 %v431, %v519
    %v521 = vpop.f32.mrf.mxu0
    %522 = vdwg.mxu0
    %v524 = vlaneseq
    %v525 = vshrl.u32 %v524, 7
    %v526 = vsub.s32 0, %v525
    %v527 = vrot.slane %v40, %v526
    %v529 = vadd.f32 %v517, %v527
    %v530 = vadd.f32 %v520, %v527
    %531 = vst.msk [vmem:[#allocation2] sm:$0xff] %vm69, %v529
    %532 = vst.msk [vmem:[#allocation2 + $0x8] sm:$0xff] %vm69, %v530
    // Predicated region
    $region38: #{tpu_custom_call.1} parent=1 // pred_check
      _
    $region39: #{tpu_custom_call.1} parent=1 // pred_check_branch
      %534 = sbr.rel (0) target = $region41
    $region40: #{tpu_custom_call.1} parent=1 // pred_region
      %s536 = ssub.s32 256, 256
      %537 = vsyncadd [#allocation3], %s536
      %s538 = sshll.u32 [#allocation2], 4
      %s539 = int_to_ptr.vmem [resolvable:$true] %s538
      %544 = dma.vmem_to_hbm [thread:$0]  %s539, 256, %s9, [#allocation3], 128, 128, 8
    $region41: #{tpu_custom_call.1} parent=1 // pred_fallthru
      _
    // Predicated region
    $region42: #{tpu_custom_call.1} parent=1 // pred_check
      _
    $region43: #{tpu_custom_call.1} parent=1 // pred_check_branch
      %546 = sbr.rel (0) target = $region45
    $region44: #{tpu_custom_call.1} parent=1 // pred_region
      %547 = dma.done [#allocation3], 256
    $region45: #{tpu_custom_call.1} parent=1 // pred_fallthru
      _
    %548 = vsyncpa [#allocation3], 1

// kernel: tpu_custom_call.1
$region0: #{tpu_custom_call.1}
  #allocation0 [shape = 'u32[]', space=smem, size = 0x4, offset = 0x4, fixed_abs, tag = 'smem constant byte address 0x4 - core index']
  #allocation1 [shape = 'u32[144,128]{1,0:T(1,128)}', space=vmem, size = 0x12000, scoped, tag = 'internal scratch']
  %s0 = inlined_call_operand.vmem [shape: bf16[16,32], index: 0, kind: input, shape index: {}]
  %s1 = inlined_call_operand.vmem [shape: bf16[32,128], index: 1, kind: input, shape index: {}]
  %s2 = inlined_call_operand.vmem [shape: f32[1,128], index: 2, kind: input, shape index: {}]
  %s3 = inlined_call_operand.vmem [shape: bf16[128,32], index: 3, kind: input, shape index: {}]
  %s4 = inlined_call_operand.vmem [shape: f32[1,32], index: 4, kind: input, shape index: {}]
  %s5 = inlined_call_operand.vmem [shape: bf16[32,32], index: 5, kind: input, shape index: {}]
  %s6 = inlined_call_operand.vmem [shape: bf16[32,128], index: 6, kind: input, shape index: {}]
  %s7 = inlined_call_operand.vmem [shape: bf16[128,32], index: 7, kind: input, shape index: {}]
  %s8 = inlined_call_operand.vmem [shape: bf16[32,32], index: 8, kind: input, shape index: {}]
  %s9 = inlined_call_operand.hbm [shape: f32[16,32], index: 9, kind: output, shape index: {}]
  %s10 = sld [smem:[#allocation0]]
  $region46: #{tpu_custom_call.1} parent=0
    _
  %s12 = ssub.s32 1, %s10
  %s13 = scalar_select 0, %s12, %s10
  $region1: #{tpu_custom_call.1} parent=0
    #allocation2 [shape = 'u8[8192]{0}', space=vmem, size = 0x2000, scoped, tag = 'output window, operand 0, single buffered']
    #allocation3 [shape = 's32[1]{0}', space=sflag, size = 0x4, scoped, tag = 'scoped memory for tpu_custom_call.1']
    %14 = vsyncpa [#allocation3], 0
    // Predicated region
    $region2: #{tpu_custom_call.1} parent=1 // pred_check
      _
    $region3: #{tpu_custom_call.1} parent=1 // pred_check_branch
      %16 = sbr.rel (0) target = $region5
    $region4: #{tpu_custom_call.1} parent=1 // pred_region
      _
    $region5: #{tpu_custom_call.1} parent=1 // pred_fallthru
      _
    // Predicated region
    $region6: #{tpu_custom_call.1} parent=1 // pred_check
      _
    $region7: #{tpu_custom_call.1} parent=1 // pred_check_branch
      %18 = sbr.rel (0) target = $region9
    $region8: #{tpu_custom_call.1} parent=1 // pred_region
      _
    $region9: #{tpu_custom_call.1} parent=1 // pred_fallthru
      _
    // Predicated region
    $region10: #{tpu_custom_call.1} parent=1 // pred_check
      _
    $region11: #{tpu_custom_call.1} parent=1 // pred_check_branch
      %20 = sbr.rel (0) target = $region13
    $region12: #{tpu_custom_call.1} parent=1 // pred_region
      _
    $region13: #{tpu_custom_call.1} parent=1 // pred_fallthru
      _
    // Predicated region
    $region14: #{tpu_custom_call.1} parent=1 // pred_check
      _
    $region15: #{tpu_custom_call.1} parent=1 // pred_check_branch
      %22 = sbr.rel (0) target = $region17
    $region16: #{tpu_custom_call.1} parent=1 // pred_region
      _
    $region17: #{tpu_custom_call.1} parent=1 // pred_fallthru
      _
    // Predicated region
    $region18: #{tpu_custom_call.1} parent=1 // pred_check
      _
    $region19: #{tpu_custom_call.1} parent=1 // pred_check_branch
      %24 = sbr.rel (0) target = $region21
    $region20: #{tpu_custom_call.1} parent=1 // pred_region
      _
    $region21: #{tpu_custom_call.1} parent=1 // pred_fallthru
      _
    // Predicated region
    $region22: #{tpu_custom_call.1} parent=1 // pred_check
      _
    $region23: #{tpu_custom_call.1} parent=1 // pred_check_branch
      %26 = sbr.rel (0) target = $region25
    $region24: #{tpu_custom_call.1} parent=1 // pred_region
      _
    $region25: #{tpu_custom_call.1} parent=1 // pred_fallthru
      _
    // Predicated region
    $region26: #{tpu_custom_call.1} parent=1 // pred_check
      _
    $region27: #{tpu_custom_call.1} parent=1 // pred_check_branch
      %28 = sbr.rel (0) target = $region29
    $region28: #{tpu_custom_call.1} parent=1 // pred_region
      _
    $region29: #{tpu_custom_call.1} parent=1 // pred_fallthru
      _
    // Predicated region
    $region30: #{tpu_custom_call.1} parent=1 // pred_check
      _
    $region31: #{tpu_custom_call.1} parent=1 // pred_check_branch
      %30 = sbr.rel (0) target = $region33
    $region32: #{tpu_custom_call.1} parent=1 // pred_region
      _
    $region33: #{tpu_custom_call.1} parent=1 // pred_fallthru
      _
    // Predicated region
    $region34: #{tpu_custom_call.1} parent=1 // pred_check
      _
    $region35: #{tpu_custom_call.1} parent=1 // pred_check_branch
      %32 = sbr.rel (0) target = $region37
    $region36: #{tpu_custom_call.1} parent=1 // pred_region
      _
    $region37: #{tpu_custom_call.1} parent=1 // pred_fallthru
      _
    %v38 = vld [vmem:[%s0] sm:$0xf]
    %v39 = vld [vmem:[%s0 + $0x4] sm:$0xf]
    %v40 = vld [vmem:[%s4] sm:$0x1]
    %v41 = vld [vmem:[%s2] sm:$0x1]
    %v43 = vlaneseq
    %v44 = vshrl.u32 %v43, 7
    %v45 = vsub.s32 0, %v44
    %v46 = vrot.slane %v41, %v45
    %v48 = vld [vmem:[%s1] sm:$0xf]
    %v49 = vld [vmem:[%s1 + $0x4] sm:$0xf]
    %v50 = vld [vmem:[%s1 + $0x8] sm:$0xf]
    %v51 = vld [vmem:[%s1 + $0xc] sm:$0xf]
    %v54 = vunpack.c.l.b16 %v38
    %v55 = vunpack.c.l.b16 %v39
    %v56 = vpack.c.b16 %v55, %v54
    %v61 = vunpack.c.l.b16 %v48
    %v62 = vunpack.c.l.b16 %v49
    %v63 = vunpack.c.l.b16 %v50
    %v64 = vunpack.c.l.b16 %v51
    %v65 = vpack.c.b16 %v62, %v61
    %v66 = vpack.c.b16 %v64, %v63
    %vm69 = vcmask 261120
    %v71 = vsel %vm69, %v56, 0
    %73 = vmatprep.subr.bf16.mxu0 0
    %74 = vmatpush1.bf16.msra.mxu0 0
    %75 = vmatprep.subr.bf16.mxu0 0
    %76 = vmatpush1.bf16.msra.mxu0 0
    %77 = vmatprep.subr.bf16.mxu0 0
    %78 = vmatpush1.bf16.msra.mxu0 0
    %79 = vmatprep.subr.bf16.mxu0 0
    %80 = vmatpush1.bf16.msra.mxu0 0
    %81 = vmatprep.subr.bf16.mxu0 0
    %82 = vmatpush1.bf16.msra.mxu0 0
    %83 = vmatprep.subr.bf16.mxu0 0
    %84 = vmatpush1.bf16.msra.mxu0 0
    %85 = vmatprep.subr.bf16.mxu0 0
    %86 = vmatpush1.bf16.msra.mxu0 %v66
    %87 = vmatprep.subr.bf16.mxu0 0
    %88 = vmatpush1.bf16.msra.mxu0 %v65
    %89 = vmatprep.subr.bf16.mxu0 0
    %90 = vmatpush2.bf16.msra.mxu0 0
    %91 = vmatprep.subr.bf16.mxu0 0
    %92 = vmatpush2.bf16.msra.mxu0 0
    %93 = vmatprep.subr.bf16.mxu0 0
    %94 = vmatpush2.bf16.msra.mxu0 0
    %95 = vmatprep.subr.bf16.mxu0 0
    %96 = vmatpush2.bf16.msra.mxu0 0
    %97 = vmatprep.subr.bf16.mxu0 0
    %98 = vmatpush2.bf16.msra.mxu0 0
    %99 = vmatprep.subr.bf16.mxu0 0
    %100 = vmatpush2.bf16.msra.mxu0 0
    %101 = vmatprep.subr.bf16.mxu0 0
    %102 = vmatpush2.bf16.msra.mxu0 0
    %103 = vmatprep.subr.bf16.mxu0 0
    %104 = vmatpush2.bf16.msra.mxu0 0
    %105 = vmatprep.mubr.bf16.mxu0 0
    %106 = vmatmul.mubr.bf16.gmra.mxu0 %v71
    %v107 = vpop.f32.mrf.mxu0
    %v108 = vadd.f32 %v46, %v107
    %v109 = vpop.f32.mrf.mxu0
    %v110 = vpop.f32.mrf.mxu0
    %v111 = vadd.f32 %v46, %v110
    %v112 = vpop.f32.mrf.mxu0
    %113 = vdwg.mxu0
    %v114 = vpack.c.bf16 %v111, %v108
    %v115 = vmul.bf16 %v114, 1056980736
    %v116 = vmul.bf16 %v114, 1027030327
    %v117 = vmul.bf16 %v116, %v114
    %v118 = vmul.bf16 %v117, %v114
    %v119 = vadd.bf16 %v114, %v118
    %v120 = vmul.bf16 %v119, 1061961548
    %v121 = vtanh.bf16.pop %v120
    %v122 = vadd.bf16 %v121, 1065369472
    %v123 = vmul.bf16 %v115, %v122
    %v124 = vld [vmem:[%s3] sm:$0xf]
    %v125 = vld [vmem:[%s3 + $0x4] sm:$0xf]
    %v126 = vld [vmem:[%s3 + $0x8] sm:$0xf]
    %v127 = vld [vmem:[%s3 + $0xc] sm:$0xf]
    %v128 = vld [vmem:[%s3 + $0x10] sm:$0xf]
    %v129 = vld [vmem:[%s3 + $0x14] sm:$0xf]
    %v130 = vld [vmem:[%s3 + $0x18] sm:$0xf]
    %v131 = vld [vmem:[%s3 + $0x1c] sm:$0xf]
    %v132 = vld [vmem:[%s3 + $0x20] sm:$0xf]
    %v133 = vld [vmem:[%s3 + $0x24] sm:$0xf]
    %v134 = vld [vmem:[%s3 + $0x28] sm:$0xf]
    %v135 = vld [vmem:[%s3 + $0x2c] sm:$0xf]
    %v136 = vld [vmem:[%s3 + $0x30] sm:$0xf]
    %v137 = vld [vmem:[%s3 + $0x34] sm:$0xf]
    %v138 = vld [vmem:[%s3 + $0x38] sm:$0xf]
    %v139 = vld [vmem:[%s3 + $0x3c] sm:$0xf]
    %v140 = vld [vmem:[%s5] sm:$0xf]
    %v141 = vld [vmem:[%s5 + $0x4] sm:$0xf]
    %v142 = vld [vmem:[%s5 + $0x8] sm:$0xf]
    %v143 = vld [vmem:[%s5 + $0xc] sm:$0xf]
    %v148 = vunpack.c.l.b16 %v140
    %v149 = vunpack.c.l.b16 %v141
    %v150 = vunpack.c.l.b16 %v142
    %v151 = vunpack.c.l.b16 %v143
    %v152 = vpack.c.b16 %v149, %v148
    %v153 = vpack.c.b16 %v151, %v150
    %156 = vmatprep.subr.bf16.mxu0 0
    %157 = vmatpush1.bf16.msra.mxu0 0
    %158 = vmatprep.subr.bf16.mxu0 0
    %159 = vmatpush1.bf16.msra.mxu0 0
    %160 = vmatprep.subr.bf16.mxu0 0
    %161 = vmatpush1.bf16.msra.mxu0 0
    %162 = vmatprep.subr.bf16.mxu0 0
    %163 = vmatpush1.bf16.msra.mxu0 0
    %164 = vmatprep.subr.bf16.mxu0 0
    %165 = vmatpush1.bf16.msra.mxu0 0
    %166 = vmatprep.subr.bf16.mxu0 0
    %167 = vmatpush1.bf16.msra.mxu0 0
    %168 = vmatprep.subr.bf16.mxu0 0
    %169 = vmatpush1.bf16.msra.mxu0 %v153
    %170 = vmatprep.subr.bf16.mxu0 0
    %171 = vmatpush1.bf16.msra.mxu0 %v152
    %172 = vmatprep.subr.bf16.mxu0 0
    %173 = vmatpush2.bf16.msra.mxu0 0
    %174 = vmatprep.subr.bf16.mxu0 0
    %175 = vmatpush2.bf16.msra.mxu0 0
    %176 = vmatprep.subr.bf16.mxu0 0
    %177 = vmatpush2.bf16.msra.mxu0 0
    %178 = vmatprep.subr.bf16.mxu0 0
    %179 = vmatpush2.bf16.msra.mxu0 0
    %180 = vmatprep.subr.bf16.mxu0 0
    %181 = vmatpush2.bf16.msra.mxu0 0
    %182 = vmatprep.subr.bf16.mxu0 0
    %183 = vmatpush2.bf16.msra.mxu0 0
    %184 = vmatprep.subr.bf16.mxu0 0
    %185 = vmatpush2.bf16.msra.mxu0 0
    %186 = vmatprep.subr.bf16.mxu0 0
    %187 = vmatpush2.bf16.msra.mxu0 0
    %188 = vmatprep.mubr.bf16.mxu0 0
    %189 = vmatmul.mubr.bf16.gmra.mxu0 %v71
    %v190 = vpop.f32.mrf.mxu0
    %v191 = vadd.f32 0.0, %v190
    %v192 = vpop.f32.mrf.mxu0
    %v193 = vpop.f32.mrf.mxu0
    %v194 = vadd.f32 0.0, %v193
    %v195 = vpop.f32.mrf.mxu0
    %196 = vdwg.mxu0
    %v197 = vpack.c.bf16 %v194, %v191
    %v198 = vld [vmem:[%s6] sm:$0xf]
    %v199 = vld [vmem:[%s6 + $0x4] sm:$0xf]
    %v200 = vld [vmem:[%s6 + $0x8] sm:$0xf]
    %v201 = vld [vmem:[%s6 + $0xc] sm:$0xf]
    %v206 = vunpack.c.l.b16 %v198
    %v207 = vunpack.c.l.b16 %v199
    %v208 = vunpack.c.l.b16 %v200
    %v209 = vunpack.c.l.b16 %v201
    %v210 = vpack.c.b16 %v207, %v206
    %v211 = vpack.c.b16 %v209, %v208
    %v215 = vsel %vm69, %v197, 0
    %217 = vmatprep.subr.bf16.mxu0 0
    %218 = vmatpush1.bf16.msra.mxu0 0
    %219 = vmatprep.subr.bf16.mxu0 0
    %220 = vmatpush1.bf16.msra.mxu0 0
    %221 = vmatprep.subr.bf16.mxu0 0
    %222 = vmatpush1.bf16.msra.mxu0 0
    %223 = vmatprep.subr.bf16.mxu0 0
    %224 = vmatpush1.bf16.msra.mxu0 0
    %225 = vmatprep.subr.bf16.mxu0 0
    %226 = vmatpush1.bf16.msra.mxu0 0
    %227 = vmatprep.subr.bf16.mxu0 0
    %228 = vmatpush1.bf16.msra.mxu0 0
    %229 = vmatprep.subr.bf16.mxu0 0
    %230 = vmatpush1.bf16.msra.mxu0 %v211
    %231 = vmatprep.subr.bf16.mxu0 0
    %232 = vmatpush1.bf16.msra.mxu0 %v210
    %233 = vmatprep.subr.bf16.mxu0 0
    %234 = vmatpush2.bf16.msra.mxu0 0
    %235 = vmatprep.subr.bf16.mxu0 0
    %236 = vmatpush2.bf16.msra.mxu0 0
    %237 = vmatprep.subr.bf16.mxu0 0
    %238 = vmatpush2.bf16.msra.mxu0 0
    %239 = vmatprep.subr.bf16.mxu0 0
    %240 = vmatpush2.bf16.msra.mxu0 0
    %241 = vmatprep.subr.bf16.mxu0 0
    %242 = vmatpush2.bf16.msra.mxu0 0
    %243 = vmatprep.subr.bf16.mxu0 0
    %244 = vmatpush2.bf16.msra.mxu0 0
    %245 = vmatprep.subr.bf16.mxu0 0
    %246 = vmatpush2.bf16.msra.mxu0 0
    %247 = vmatprep.subr.bf16.mxu0 0
    %248 = vmatpush2.bf16.msra.mxu0 0
    %249 = vmatprep.mubr.bf16.mxu0 0
    %250 = vmatmul.mubr.bf16.gmra.mxu0 %v215
    %v251 = vpop.f32.mrf.mxu0
    %v252 = vadd.f32 %v46, %v251
    %v253 = vpop.f32.mrf.mxu0
    %v254 = vpop.f32.mrf.mxu0
    %v255 = vadd.f32 %v46, %v254
    %v256 = vpop.f32.mrf.mxu0
    %257 = vdwg.mxu0
    %v258 = vpack.c.bf16 %v255, %v252
    %v259 = vmul.bf16 %v258, 1056980736
    %v260 = vmul.bf16 %v258, 1027030327
    %v261 = vmul.bf16 %v260, %v258
    %v262 = vmul.bf16 %v261, %v258
    %v263 = vadd.bf16 %v258, %v262
    %v264 = vmul.bf16 %v263, 1061961548
    %v265 = vtanh.bf16.pop %v264
    %v266 = vadd.bf16 %v265, 1065369472
    %v267 = vmul.bf16 %v259, %v266
    %v268 = vld [vmem:[%s7] sm:$0xf]
    %v269 = vld [vmem:[%s7 + $0x4] sm:$0xf]
    %v270 = vld [vmem:[%s7 + $0x8] sm:$0xf]
    %v271 = vld [vmem:[%s7 + $0xc] sm:$0xf]
    %v272 = vld [vmem:[%s7 + $0x10] sm:$0xf]
    %v273 = vld [vmem:[%s7 + $0x14] sm:$0xf]
    %v274 = vld [vmem:[%s7 + $0x18] sm:$0xf]
    %v275 = vld [vmem:[%s7 + $0x1c] sm:$0xf]
    %v276 = vld [vmem:[%s7 + $0x20] sm:$0xf]
    %v277 = vld [vmem:[%s7 + $0x24] sm:$0xf]
    %v278 = vld [vmem:[%s7 + $0x28] sm:$0xf]
    %v279 = vld [vmem:[%s7 + $0x2c] sm:$0xf]
    %v280 = vld [vmem:[%s7 + $0x30] sm:$0xf]
    %v281 = vld [vmem:[%s7 + $0x34] sm:$0xf]
    %v282 = vld [vmem:[%s7 + $0x38] sm:$0xf]
    %v283 = vld [vmem:[%s7 + $0x3c] sm:$0xf]
    %v300 = vunpack.c.l.b16 %v268
    %v301 = vunpack.c.l.b16 %v269
    %v302 = vunpack.c.l.b16 %v270
    %v303 = vunpack.c.l.b16 %v271
    %v304 = vunpack.c.l.b16 %v272
    %v305 = vunpack.c.l.b16 %v273
    %v306 = vunpack.c.l.b16 %v274
    %v307 = vunpack.c.l.b16 %v275
    %v308 = vunpack.c.l.b16 %v276
    %v309 = vunpack.c.l.b16 %v277
    %v310 = vunpack.c.l.b16 %v278
    %v311 = vunpack.c.l.b16 %v279
    %v312 = vunpack.c.l.b16 %v280
    %v313 = vunpack.c.l.b16 %v281
    %v314 = vunpack.c.l.b16 %v282
    %v315 = vunpack.c.l.b16 %v283
    %v316 = vpack.c.b16 %v301, %v300
    %v317 = vpack.c.b16 %v303, %v302
    %v318 = vpack.c.b16 %v305, %v304
    %v319 = vpack.c.b16 %v307, %v306
    %v320 = vpack.c.b16 %v309, %v308
    %v321 = vpack.c.b16 %v311, %v310
    %v322 = vpack.c.b16 %v313, %v312
    %v323 = vpack.c.b16 %v315, %v314
    %332 = vmatprep.subr.bf16.mxu0 0
    %333 = vmatpush1.bf16.msra.mxu0 %v323
    %334 = vmatprep.subr.bf16.mxu0 0
    %335 = vmatpush1.bf16.msra.mxu0 %v322
    %336 = vmatprep.subr.bf16.mxu0 0
    %337 = vmatpush1.bf16.msra.mxu0 %v321
    %338 = vmatprep.subr.bf16.mxu0 0
    %339 = vmatpush1.bf16.msra.mxu0 %v320
    %340 = vmatprep.subr.bf16.mxu0 0
    %341 = vmatpush1.bf16.msra.mxu0 %v319
    %342 = vmatprep.subr.bf16.mxu0 0
    %343 = vmatpush1.bf16.msra.mxu0 %v318
    %344 = vmatprep.subr.bf16.mxu0 0
    %345 = vmatpush1.bf16.msra.mxu0 %v317
    %346 = vmatprep.subr.bf16.mxu0 0
    %347 = vmatpush1.bf16.msra.mxu0 %v316
    %348 = vmatprep.subr.bf16.mxu0 0
    %349 = vmatpush2.bf16.msra.mxu0 0
    %350 = vmatprep.subr.bf16.mxu0 0
    %351 = vmatpush2.bf16.msra.mxu0 0
    %352 = vmatprep.subr.bf16.mxu0 0
    %353 = vmatpush2.bf16.msra.mxu0 0
    %354 = vmatprep.subr.bf16.mxu0 0
    %355 = vmatpush2.bf16.msra.mxu0 0
    %356 = vmatprep.subr.bf16.mxu0 0
    %357 = vmatpush2.bf16.msra.mxu0 0
    %358 = vmatprep.subr.bf16.mxu0 0
    %359 = vmatpush2.bf16.msra.mxu0 0
    %360 = vmatprep.subr.bf16.mxu0 0
    %361 = vmatpush2.bf16.msra.mxu0 0
    %362 = vmatprep.subr.bf16.mxu0 0
    %363 = vmatpush2.bf16.msra.mxu0 0
    %364 = vmatprep.mubr.bf16.mxu0 0
    %365 = vmatmul.mubr.bf16.gmra.mxu0 %v267
    %v366 = vpop.f32.mrf.mxu0
    %v367 = vadd.f32 0.0, %v366
    %v368 = vpop.f32.mrf.mxu0
    %v369 = vpop.f32.mrf.mxu0
    %v370 = vadd.f32 0.0, %v369
    %v371 = vpop.f32.mrf.mxu0
    %372 = vdwg.mxu0
    %v373 = vpack.c.bf16 %v370, %v367
    %v374 = vld [vmem:[%s8] sm:$0xf]
    %v375 = vld [vmem:[%s8 + $0x4] sm:$0xf]
    %v376 = vld [vmem:[%s8 + $0x8] sm:$0xf]
    %v377 = vld [vmem:[%s8 + $0xc] sm:$0xf]
    %v382 = vunpack.c.l.b16 %v374
    %v383 = vunpack.c.l.b16 %v375
    %v384 = vunpack.c.l.b16 %v376
    %v385 = vunpack.c.l.b16 %v377
    %v386 = vpack.c.b16 %v383, %v382
    %v387 = vpack.c.b16 %v385, %v384
    %v391 = vsel %vm69, %v373, 0
    %393 = vmatprep.subr.bf16.mxu0 0
    %394 = vmatpush1.bf16.msra.mxu0 0
    %395 = vmatprep.subr.bf16.mxu0 0
    %396 = vmatpush1.bf16.msra.mxu0 0
    %397 = vmatprep.subr.bf16.mxu0 0
    %398 = vmatpush1.bf16.msra.mxu0 0
    %399 = vmatprep.subr.bf16.mxu0 0
    %400 = vmatpush1.bf16.msra.mxu0 0
    %401 = vmatprep.subr.bf16.mxu0 0
    %402 = vmatpush1.bf16.msra.mxu0 0
    %403 = vmatprep.subr.bf16.mxu0 0
    %404 = vmatpush1.bf16.msra.mxu0 0
    %405 = vmatprep.subr.bf16.mxu0 0
    %406 = vmatpush1.bf16.msra.mxu0 %v387
    %407 = vmatprep.subr.bf16.mxu0 0
    %408 = vmatpush1.bf16.msra.mxu0 %v386
    %409 = vmatprep.subr.bf16.mxu0 0
    %410 = vmatpush2.bf16.msra.mxu0 0
    %411 = vmatprep.subr.bf16.mxu0 0
    %412 = vmatpush2.bf16.msra.mxu0 0
    %413 = vmatprep.subr.bf16.mxu0 0
    %414 = vmatpush2.bf16.msra.mxu0 0
    %415 = vmatprep.subr.bf16.mxu0 0
    %416 = vmatpush2.bf16.msra.mxu0 0
    %417 = vmatprep.subr.bf16.mxu0 0
    %418 = vmatpush2.bf16.msra.mxu0 0
    %419 = vmatprep.subr.bf16.mxu0 0
    %420 = vmatpush2.bf16.msra.mxu0 0
    %421 = vmatprep.subr.bf16.mxu0 0
    %422 = vmatpush2.bf16.msra.mxu0 0
    %423 = vmatprep.subr.bf16.mxu0 0
    %424 = vmatpush2.bf16.msra.mxu0 0
    %425 = vmatprep.mubr.bf16.mxu0 0
    %426 = vmatmul.mubr.bf16.gmra.mxu0 %v391
    %v427 = vpop.f32.mrf.mxu0
    %v428 = vadd.f32 0.0, %v427
    %v429 = vpop.f32.mrf.mxu0
    %v430 = vpop.f32.mrf.mxu0
    %v431 = vadd.f32 0.0, %v430
    %v432 = vpop.f32.mrf.mxu0
    %433 = vdwg.mxu0
    %v450 = vunpack.c.l.b16 %v124
    %v451 = vunpack.c.l.b16 %v125
    %v452 = vunpack.c.l.b16 %v126
    %v453 = vunpack.c.l.b16 %v127
    %v454 = vunpack.c.l.b16 %v128
    %v455 = vunpack.c.l.b16 %v129
    %v456 = vunpack.c.l.b16 %v130
    %v457 = vunpack.c.l.b16 %v131
    %v458 = vunpack.c.l.b16 %v132
    %v459 = vunpack.c.l.b16 %v133
    %v460 = vunpack.c.l.b16 %v134
    %v461 = vunpack.c.l.b16 %v135
    %v462 = vunpack.c.l.b16 %v136
    %v463 = vunpack.c.l.b16 %v137
    %v464 = vunpack.c.l.b16 %v138
    %v465 = vunpack.c.l.b16 %v139
    %v466 = vpack.c.b16 %v451, %v450
    %v467 = vpack.c.b16 %v453, %v452
    %v468 = vpack.c.b16 %v455, %v454
    %v469 = vpack.c.b16 %v457, %v456
    %v470 = vpack.c.b16 %v459, %v458
    %v471 = vpack.c.b16 %v461, %v460
    %v472 = vpack.c.b16 %v463, %v462
    %v473 = vpack.c.b16 %v465, %v464
    %482 = vmatprep.subr.bf16.mxu0 0
    %483 = vmatpush1.bf16.msra.mxu0 %v473
    %484 = vmatprep.subr.bf16.mxu0 0
    %485 = vmatpush1.bf16.msra.mxu0 %v472
    %486 = vmatprep.subr.bf16.mxu0 0
    %487 = vmatpush1.bf16.msra.mxu0 %v471
    %488 = vmatprep.subr.bf16.mxu0 0
    %489 = vmatpush1.bf16.msra.mxu0 %v470
    %490 = vmatprep.subr.bf16.mxu0 0
    %491 = vmatpush1.bf16.msra.mxu0 %v469
    %492 = vmatprep.subr.bf16.mxu0 0
    %493 = vmatpush1.bf16.msra.mxu0 %v468
    %494 = vmatprep.subr.bf16.mxu0 0
    %495 = vmatpush1.bf16.msra.mxu0 %v467
    %496 = vmatprep.subr.bf16.mxu0 0
    %497 = vmatpush1.bf16.msra.mxu0 %v466
    %498 = vmatprep.subr.bf16.mxu0 0
    %499 = vmatpush2.bf16.msra.mxu0 0
    %500 = vmatprep.subr.bf16.mxu0 0
    %501 = vmatpush2.bf16.msra.mxu0 0
    %502 = vmatprep.subr.bf16.mxu0 0
    %503 = vmatpush2.bf16.msra.mxu0 0
    %504 = vmatprep.subr.bf16.mxu0 0
    %505 = vmatpush2.bf16.msra.mxu0 0
    %506 = vmatprep.subr.bf16.mxu0 0
    %507 = vmatpush2.bf16.msra.mxu0 0
    %508 = vmatprep.subr.bf16.mxu0 0
    %509 = vmatpush2.bf16.msra.mxu0 0
    %510 = vmatprep.subr.bf16.mxu0 0
    %511 = vmatpush2.bf16.msra.mxu0 0
    %512 = vmatprep.subr.bf16.mxu0 0
    %513 = vmatpush2.bf16.msra.mxu0 0
    %514 = vmatprep.mubr.bf16.mxu0 0
    %515 = vmatmul.mubr.bf16.gmra.mxu0 %v123
    %v516 = vpop.f32.mrf.mxu0
    %v517 = vadd.f32 %v428, %v516
    %v518 = vpop.f32.mrf.mxu0
    %v519 = vpop.f32.mrf.mxu0
    %v520 = vadd.f32 %v431, %v519
    %v521 = vpop.f32.mrf.mxu0
    %522 = vdwg.mxu0
    %v524 = vlaneseq
    %v525 = vshrl.u32 %v524, 7
    %v526 = vsub.s32 0, %v525
    %v527 = vrot.slane %v40, %v526
    %v529 = vadd.f32 %v517, %v527
    %v530 = vadd.f32 %v520, %v527
    %531 = vst.msk [vmem:[#allocation2] sm:$0xff] %vm69, %v529
    %532 = vst.msk [vmem:[#allocation2 + $0x8] sm:$0xff] %vm69, %v530
    // Predicated region
    $region38: #{tpu_custom_call.1} parent=1 // pred_check
      _
    $region39: #{tpu_custom_call.1} parent=1 // pred_check_branch
      %534 = sbr.rel (0) target = $region41
    $region40: #{tpu_custom_call.1} parent=1 // pred_region
      %s536 = ssub.s32 256, 256
      %537 = vsyncadd [#allocation3], %s536
      %s538 = sshll.u32 [#allocation2], 4
      %s539 = int_to_ptr.vmem [resolvable:$true] %s538
      %544 = dma.vmem_to_hbm [thread:$0]  %s539, 256, %s9, [#allocation3], 128, 128, 8
    $region41: #{tpu_custom_call.1} parent=1 // pred_fallthru
      _
    // Predicated region
    $region42: #{tpu_custom_call.1} parent=1 // pred_check
      _
    $region43: #{tpu_custom_call.1} parent=1 // pred_check_branch
      %546 = sbr.rel (0) target = $region45
    $region44: #{tpu_custom_call.1} parent=1 // pred_region
      %547 = dma.done [#allocation3], 256
    $region45: #{tpu_custom_call.1} parent=1 // pred_fallthru
      _
    %548 = vsyncpa [#allocation3], 1

</llo_original>
